<compile_context>
chip_gen: v6e
topology: v6e:2x2x1
jax: 0.10.0
libtpu: 0.0.40
codegen_flags: <defaults>
</compile_context>

<pallas_src>
import functools

import jax
import jax.numpy as jnp
from jax.experimental import pallas as pl
from jax.experimental.pallas import tpu as pltpu


def _round_up(x, m):
    return (x + m - 1) // m * m


def _device_tile_caps():
    """Per-generation tile caps (tm, tn, tk) for f32."""
    try:
        kind = jax.devices()[0].device_kind.lower()
    except Exception:  # pragma: no cover - defensive; default caps are safe everywhere
        kind = ""
    if "v5 lite" in kind or "v5e" in kind or "v5litepod" in kind:
        # f32 on v5e is already at/above the HBM ridge with 256-class tiles; keep the
        # footprint inside the 16 MiB default scoped VMEM.
        return 256, 256, 512
    # v6e / v7x (and unknown): 512x512x1024 f32 tiles ~ 11 MiB double-buffered, inside the
    # 32 MiB default scoped VMEM on both.  Do NOT carry a v6e "huge tile" config to v7x
    # (64 MiB physical VMEM).
    return 512, 512, 1024


def _largest_block(extent, cap, align):
    """Largest multiple of `align` that divides `extent` and is <= cap (>= align)."""
    best = align
    t = align
    limit = min(extent, max(cap, align))
    while t <= limit:
        if extent % t == 0:
            best = t
        t += align
    return best


def _pick_row_tile(batch, tm_max):
    """Row (sublane) tile: exact fit for small B, min-pad-waste candidate otherwise."""
    bp8 = _round_up(batch, 8)
    if bp8 <= tm_max:
        return bp8  # single row-block, zero waste
    cands = [t for t in (512, 448, 384, 320, 256, 192, 128, 64) if t <= tm_max] or [tm_max]
    best_t, best_pad = cands[0], _round_up(bp8, cands[0])
    for t in cands:
        p = _round_up(bp8, t)
        if p < best_pad or (p == best_pad and t > best_t):
            best_t, best_pad = t, p
    return best_t


def _epilogue(a):
    # sigmoid(a) = 0.5*(tanh(a/2)+1): one EUP tanh, no full-tile f32 divide on the VPU,
    # and no exp overflow for very negative a.
    return a * (0.5 * (jnp.tanh(0.5 * a) + 1.0))


def _kernel_f32_inplace(x_ref, w_ref, b_ref, o_ref):
    """f32 output: accumulate directly into the resident output block (no scratch)."""
    k = pl.program_id(2)

    @pl.when(k == 0)
    def _():
        o_ref[...] = jnp.zeros_like(o_ref)

    # x tile [tm, tk] contracted with weight tile [tn, tk] on the last dim of both -> [tm, tn];
    # the weight stays in its native PyTorch [Cout, Cin] layout (no wrapper transpose).
    o_ref[...] += jax.lax.dot_general(
        x_ref[...], w_ref[...],
        dimension_numbers=(((1,), (1,)), ((), ())),
        preferred_element_type=jnp.float32)

    @pl.when(k == pl.num_programs(2) - 1)
    def _():
        a = o_ref[...] + b_ref[...]
        o_ref[...] = _epilogue(a)


def _kernel_acc_scratch(x_ref, w_ref, b_ref, o_ref, acc_ref):
    """Narrow output dtypes: f32 VMEM accumulator, cast on finalize."""
    k = pl.program_id(2)

    @pl.when(k == 0)
    def _():
        acc_ref[...] = jnp.zeros_like(acc_ref)

    acc_ref[...] += jax.lax.dot_general(
        x_ref[...], w_ref[...],
        dimension_numbers=(((1,), (1,)), ((), ())),
        preferred_element_type=jnp.float32)

    @pl.when(k == pl.num_programs(2) - 1)
    def _():
        a = acc_ref[...] + b_ref[...].astype(jnp.float32)
        o_ref[...] = _epilogue(a).astype(o_ref.dtype)


def make_linear_sigmoid_mul(weight, bias=None, *, tm_max=None, tn_max=None, tk_max=None):
    """One-time parameter prep + jitted caller.

    weight: [Cout, Cin] (PyTorch nn.Linear layout); bias: [Cout] or None.
    Returns f(x: [B, Cin]) -> [B, Cout] computing a*sigmoid(a), a = x @ weight.T + bias.
    """
    Cout, Cin = weight.shape
    cap_m, cap_n, cap_k = _device_tile_caps()
    tm_max = tm_max or cap_m
    tn_max = tn_max or cap_n
    tk_max = tk_max or cap_k

    Np = _round_up(Cout, 128)
    Kp = _round_up(Cin, 128)

    if bias is None:
        bias = jnp.zeros((Cout,), weight.dtype)

    # One-time padding of the static parameters: the per-call path never re-pads the weight.
    w_pad = weight if (Np, Kp) == (Cout, Cin) else jnp.pad(
        weight, ((0, Np - Cout), (0, Kp - Cin)))
    b_pad = (bias if Np == Cout else jnp.pad(bias, (0, Np - Cout))).reshape(1, Np)

    tk = _largest_block(Kp, tk_max, 128)

    @jax.jit
    def call(x):
        B, Cin_x = x.shape
        assert Cin_x == Cin, f"expected last dim {Cin}, got {Cin_x}"

        tm = _pick_row_tile(B, tm_max)
        Bp = _round_up(B, tm)
        gm = Bp // tm

        # tn: largest 128-multiple divisor of Np within the cap; when the row grid has a
        # single block, prefer >= 2 column blocks so both v7x TensorCores are used.
        tn = _largest_block(Np, tn_max, 128)
        if gm == 1 and Np // tn == 1 and Np >= 256:
            tn2 = _largest_block(Np, Np // 2, 128)
            if Np // tn2 >= 2:
                tn = tn2
        gn = Np // tn
        gk = Kp // tk

        xp = x if (Bp, Kp) == (B, Cin) else jnp.pad(x, ((0, Bp - B), (0, Kp - Cin)))

        out_dtype = x.dtype
        f32_out = jnp.dtype(out_dtype) == jnp.dtype(jnp.float32)
        if f32_out:
            kernel = _kernel_f32_inplace
            scratch = ()
        else:
            kernel = _kernel_acc_scratch
            scratch = (pltpu.VMEM((tm, tn), jnp.float32),)

        isz_x = jnp.dtype(x.dtype).itemsize
        isz_w = jnp.dtype(w_pad.dtype).itemsize
        isz_o = jnp.dtype(out_dtype).itemsize
        cost = pl.CostEstimate(
            flops=2 * Bp * Kp * Np,
            transcendentals=Bp * Np,
            # Tiled traffic: x is re-read gn times, weight gm times, bias per grid step.
            bytes_accessed=(isz_x * Bp * Kp * gn
                            + isz_w * Np * Kp * gm
                            + isz_w * Np * gm * gk
                            + isz_o * Bp * Np),
        )

        out = pl.pallas_call(
            kernel,
            out_shape=jax.ShapeDtypeStruct((Bp, Np), out_dtype),
            grid_spec=pltpu.PrefetchScalarGridSpec(
                num_scalar_prefetch=0,
                grid=(gm, gn, gk),
                in_specs=[
                    pl.BlockSpec((tm, tk), lambda i, j, k: (i, k)),   # x
                    pl.BlockSpec((tn, tk), lambda i, j, k: (j, k)),   # weight (native layout)
                    pl.BlockSpec((1, tn), lambda i, j, k: (0, j)),    # bias row
                ],
                out_specs=pl.BlockSpec((tm, tn), lambda i, j, k: (i, j)),
                scratch_shapes=scratch,
            ),
            compiler_params=pltpu.CompilerParams(
                dimension_semantics=("parallel", "parallel", "arbitrary"),
            ),
            cost_estimate=cost,
        )(xp, w_pad, b_pad)

        if (Bp, Np) != (B, Cout):
            out = out[:B, :Cout]
        return out

    return call


def linear_sigmoid_mul(x, weight, bias):
    """Convenience one-off wrapper (prefer make_linear_sigmoid_mul for repeated calls)."""
    return make_linear_sigmoid_mul(weight, bias)(x)


def _reference(x, weight, bias):
    a = jnp.dot(x, weight.T, precision=jax.lax.Precision.HIGHEST) + bias
    return a * jax.nn.sigmoid(a)


if __name__ == "__main__":
    key = jax.random.PRNGKey(0)
    k_x, k_w, k_b = jax.random.split(key, 3)

    batch = 8
    in_channels = 32
    out_channels = 32

    # nn.Linear-style init: U(-1/sqrt(in_channels), 1/sqrt(in_channels))
    bound = 1.0 / (in_channels ** 0.5)
    weight = jax.random.uniform(
        k_w, (out_channels, in_channels), jnp.float32, -bound, bound)
    bias = jax.random.uniform(
        k_b, (out_channels,), jnp.float32, -bound, bound)

    x = jax.random.normal(k_x, (batch, in_channels), jnp.float32)

    fn = make_linear_sigmoid_mul(weight, bias)
    out = fn(x)
    out = jax.block_until_ready(out)

    ref = _reference(x, weight, bias)
    assert out.shape == (batch, out_channels)
    assert jnp.allclose(out, ref, atol=1e-4, rtol=1e-4), "mismatch vs reference"

    print("KERNEL_OK")
</pallas_src>

<mosaic_0001>
module attributes {stable_mosaic.version = 11 : i64} {
  func.func @_kernel_f32_inplace(%arg0: i32, %arg1: i32, %arg2: i32, %arg3: memref<8x128xf32, #tpu.memory_space<vmem>>, %arg4: memref<128x128xf32, #tpu.memory_space<vmem>>, %arg5: memref<1x128xf32, #tpu.memory_space<vmem>>, %arg6: memref<8x128xf32, #tpu.memory_space<vmem>>) attributes {dimension_semantics = [#tpu.dimension_semantics<parallel>, #tpu.dimension_semantics<parallel>, #tpu.dimension_semantics<arbitrary>], iteration_bounds = array<i64: 1, 1, 1>, scalar_prefetch = 0 : i64, scratch_operands = 0 : i64, tpu.core_type = #tpu.core_type<tc>, window_params = [{transform_indices = @transform_0, window_bounds = array<i64: 8, 128>}, {transform_indices = @transform_1, window_bounds = array<i64: 128, 128>}, {transform_indices = @transform_2, window_bounds = array<i64: 1, 128>}, {transform_indices = @transform_3, window_bounds = array<i64: 8, 128>}]} {
    %c0_i32 = arith.constant 0 : i32
    %0 = arith.cmpi eq, %arg2, %c0_i32 : i32
    %1 = arith.extui %0 : i1 to i32
    %c0_i32_0 = arith.constant 0 : i32
    %2 = arith.cmpi ne, %1, %c0_i32_0 : i32
    scf.if %2 {
      %cst_10 = arith.constant 0.000000e+00 : f32
      %12 = vector.broadcast %cst_10 : f32 to vector<8x128xf32>
      %c0_11 = arith.constant 0 : index
      %c0_12 = arith.constant 0 : index
      %13 = vector.load %arg6[%c0_11, %c0_12] : memref<8x128xf32, #tpu.memory_space<vmem>>, vector<8x128xf32>
      tpu.vector_store %arg6[%c0_11, %c0_12], %12 {strides = array<i32>} : memref<8x128xf32, #tpu.memory_space<vmem>>, vector<8x128xf32>,
    } else {
    }
    %c0 = arith.constant 0 : index
    %c0_1 = arith.constant 0 : index
    %3 = vector.load %arg6[%c0, %c0_1] : memref<8x128xf32, #tpu.memory_space<vmem>>, vector<8x128xf32>
    %c0_2 = arith.constant 0 : index
    %c0_3 = arith.constant 0 : index
    %4 = vector.load %arg3[%c0_2, %c0_3] : memref<8x128xf32, #tpu.memory_space<vmem>>, vector<8x128xf32>
    %c0_4 = arith.constant 0 : index
    %c0_5 = arith.constant 0 : index
    %5 = vector.load %arg4[%c0_4, %c0_5] : memref<128x128xf32, #tpu.memory_space<vmem>>, vector<128x128xf32>
    %cst = arith.constant dense<0.000000e+00> : vector<8x128xf32>
    %6 = tpu.matmul %4, %5, %cst {dimension_numbers = #tpu.dot_dimension_numbers<[1], [1], [0], [0], [0, 0, 1, 0], [], []>} : vector<8x128xf32>, vector<128x128xf32>, vector<8x128xf32> -> vector<8x128xf32>
    %7 = arith.addf %3, %6 : vector<8x128xf32>
    %c0_6 = arith.constant 0 : index
    %c0_7 = arith.constant 0 : index
    %8 = vector.load %arg6[%c0_6, %c0_7] : memref<8x128xf32, #tpu.memory_space<vmem>>, vector<8x128xf32>
    tpu.vector_store %arg6[%c0_6, %c0_7], %7 {strides = array<i32>} : memref<8x128xf32, #tpu.memory_space<vmem>>, vector<8x128xf32>,
    %c0_i32_8 = arith.constant 0 : i32
    %9 = arith.cmpi eq, %arg2, %c0_i32_8 : i32
    %10 = arith.extui %9 : i1 to i32
    %c0_i32_9 = arith.constant 0 : i32
    %11 = arith.cmpi ne, %10, %c0_i32_9 : i32
    scf.if %11 {
      %c0_10 = arith.constant 0 : index
      %c0_11 = arith.constant 0 : index
      %12 = vector.load %arg6[%c0_10, %c0_11] : memref<8x128xf32, #tpu.memory_space<vmem>>, vector<8x128xf32>
      %c0_12 = arith.constant 0 : index
      %c0_13 = arith.constant 0 : index
      %13 = vector.load %arg5[%c0_12, %c0_13] : memref<1x128xf32, #tpu.memory_space<vmem>>, vector<1x128xf32>
      %14 = vector.broadcast %13 : vector<1x128xf32> to vector<8x128xf32>
      %15 = arith.addf %12, %14 : vector<8x128xf32>
      %cst_14 = arith.constant 5.000000e-01 : f32
      %16 = vector.broadcast %cst_14 : f32 to vector<8x128xf32>
      %17 = arith.mulf %16, %15 : vector<8x128xf32>
      %18 = math.tanh %17 : vector<8x128xf32>
      %cst_15 = arith.constant 1.000000e+00 : f32
      %19 = vector.broadcast %cst_15 : f32 to vector<8x128xf32>
      %20 = arith.addf %18, %19 : vector<8x128xf32>
      %cst_16 = arith.constant 5.000000e-01 : f32
      %21 = vector.broadcast %cst_16 : f32 to vector<8x128xf32>
      %22 = arith.mulf %21, %20 : vector<8x128xf32>
      %23 = arith.mulf %15, %22 : vector<8x128xf32>
      %c0_17 = arith.constant 0 : index
      %c0_18 = arith.constant 0 : index
      %24 = vector.load %arg6[%c0_17, %c0_18] : memref<8x128xf32, #tpu.memory_space<vmem>>, vector<8x128xf32>
      tpu.vector_store %arg6[%c0_17, %c0_18], %23 {strides = array<i32>} : memref<8x128xf32, #tpu.memory_space<vmem>>, vector<8x128xf32>,
    } else {
    }
    return
  }
  func.func @transform_0(%arg0: i32, %arg1: i32, %arg2: i32) -> (i32, i32) {
    %c0_i32 = arith.constant 0 : i32
    return %arg0, %arg2 : i32, i32
  }
  func.func @transform_1(%arg0: i32, %arg1: i32, %arg2: i32) -> (i32, i32) {
    %c0_i32 = arith.constant 0 : i32
    return %arg1, %arg2 : i32, i32
  }
  func.func @transform_2(%arg0: i32, %arg1: i32, %arg2: i32) -> (i32, i32) {
    %c0_i32 = arith.constant 0 : i32
    %c0_i32_0 = arith.constant 0 : i32
    return %c0_i32, %arg1 : i32, i32
  }
  func.func @transform_3(%arg0: i32, %arg1: i32, %arg2: i32) -> (i32, i32) {
    %c0_i32 = arith.constant 0 : i32
    return %arg0, %arg1 : i32, i32
  }
}

</mosaic_0001>

<llo_original>
// kernel: call.1
$region0: #{call.1}
  #allocation0 [shape = 'u32[]', space=smem, size = 0x4, offset = 0x4, fixed_abs, tag = 'smem constant byte address 0x4 - core index']
  #allocation1 [shape = 'u32[144,128]{1,0:T(1,128)}', space=vmem, size = 0x12000, scoped, tag = 'internal scratch']
  %s0 = inlined_call_operand.vmem [shape: f32[8,128], index: 0, kind: input, shape index: {}]
  %s1 = inlined_call_operand.hbm [shape: f32[128,128], index: 1, kind: input, shape index: {}]
  %s2 = inlined_call_operand.vmem [shape: f32[1,128], index: 2, kind: input, shape index: {}]
  %s3 = inlined_call_operand.hbm [shape: f32[8,128], index: 3, kind: output, shape index: {}]
  %s4 = sld [smem:[#allocation0]]
  $region34: #{call.1} parent=0
    _
  %s6 = ssub.s32 1, %s4
  %s7 = scalar_select 0, %s6, %s4
  $region1: #{call.1} parent=0
    #allocation2 [shape = 'u8[65536]{0}', space=vmem, size = 0x10000, scoped, tag = 'input window, operand 1, single buffered']
    #allocation3 [shape = 's32[1]{0}', space=sflag, size = 0x4, scoped, tag = 'scoped memory for call.1']
    #allocation4 [shape = 's32[1]{0}', space=sflag, size = 0x4, scoped, tag = 'scoped memory for call.1']
    #allocation5 [shape = 'u8[4096]{0}', space=vmem, size = 0x1000, scoped, tag = 'output window, operand 0, single buffered']
    %8 = vsyncpa [#allocation3], 0
    %9 = vsyncpa [#allocation4], 0
    // Predicated region
    $region2: #{call.1} parent=1 // pred_check
      _
    $region3: #{call.1} parent=1 // pred_check_branch
      %11 = sbr.rel (0) target = $region5
    $region4: #{call.1} parent=1 // pred_region
      _
    $region5: #{call.1} parent=1 // pred_fallthru
      _
    // Predicated region
    $region6: #{call.1} parent=1 // pred_check
      _
    $region7: #{call.1} parent=1 // pred_check_branch
      %13 = sbr.rel (0) target = $region9
    $region8: #{call.1} parent=1 // pred_region
      %s15 = ssub.s32 2048, 2048
      %16 = vsyncadd [#allocation3], %s15
      %s17 = sshll.u32 [#allocation2], 4
      %s18 = int_to_ptr.vmem [resolvable:$true] %s17
      %23 = dma.hbm_to_vmem [thread:$0]  %s1, 2048, %s18, [#allocation3], 128, 128, 8
    $region9: #{call.1} parent=1 // pred_fallthru
      _
    // Predicated region
    $region10: #{call.1} parent=1 // pred_check
      _
    $region11: #{call.1} parent=1 // pred_check_branch
      %25 = sbr.rel (0) target = $region13
    $region12: #{call.1} parent=1 // pred_region
      _
    $region13: #{call.1} parent=1 // pred_fallthru
      _
    // Predicated region
    $region14: #{call.1} parent=1 // pred_check
      _
    $region15: #{call.1} parent=1 // pred_check_branch
      %27 = sbr.rel (0) target = $region17
    $region16: #{call.1} parent=1 // pred_region
      %28 = dma.done [#allocation3], 2048
    $region17: #{call.1} parent=1 // pred_fallthru
      _
    %p29 = scmp.eq.s32.totalorder 0, 0
    // Predicated region
    $region18: #{call.1} parent=1 // pred_check
      %p30 = pneg %p29
    $region19: #{call.1} parent=1 // pred_check_branch
      %32 = sbr.rel (%p30) target = $region21
    $region20: #{call.1} parent=1 // pred_region
      %33 = vst [vmem:[#allocation5] sm:$0xff] 0.0
    $region21: #{call.1} parent=1 // pred_fallthru
      _
    %v34 = vld [vmem:[#allocation5] sm:$0xff]
    %v35 = vld [vmem:[%s0] sm:$0xff]
    %v36 = vld [vmem:[#allocation2] sm:$0xff]
    %v37 = vld [vmem:[#allocation2 + $0x8] sm:$0xff]
    %v38 = vld [vmem:[#allocation2 + $0x10] sm:$0xff]
    %v39 = vld [vmem:[#allocation2 + $0x18] sm:$0xff]
    %v40 = vld [vmem:[#allocation2 + $0x20] sm:$0xff]
    %v41 = vld [vmem:[#allocation2 + $0x28] sm:$0xff]
    %v42 = vld [vmem:[#allocation2 + $0x30] sm:$0xff]
    %v43 = vld [vmem:[#allocation2 + $0x38] sm:$0xff]
    %v44 = vld [vmem:[#allocation2 + $0x40] sm:$0xff]
    %v45 = vld [vmem:[#allocation2 + $0x48] sm:$0xff]
    %v46 = vld [vmem:[#allocation2 + $0x50] sm:$0xff]
    %v47 = vld [vmem:[#allocation2 + $0x58] sm:$0xff]
    %v48 = vld [vmem:[#allocation2 + $0x60] sm:$0xff]
    %v49 = vld [vmem:[#allocation2 + $0x68] sm:$0xff]
    %v50 = vld [vmem:[#allocation2 + $0x70] sm:$0xff]
    %v51 = vld [vmem:[#allocation2 + $0x78] sm:$0xff]
    %52 = vmatprep.subr.mxu0 0.0
    %53 = vmatpush1.xpose.msra.mxu0 %v51
    %54 = vmatprep.subr.mxu0 0.0
    %55 = vmatpush1.xpose.msra.mxu0 %v50
    %56 = vmatprep.subr.mxu0 0.0
    %57 = vmatpush1.xpose.msra.mxu0 %v49
    %58 = vmatprep.subr.mxu0 0.0
    %59 = vmatpush1.xpose.msra.mxu0 %v48
    %60 = vmatprep.subr.mxu0 0.0
    %61 = vmatpush1.xpose.msra.mxu0 %v47
    %62 = vmatprep.subr.mxu0 0.0
    %63 = vmatpush1.xpose.msra.mxu0 %v46
    %64 = vmatprep.subr.mxu0 0.0
    %65 = vmatpush1.xpose.msra.mxu0 %v45
    %66 = vmatprep.subr.mxu0 0.0
    %67 = vmatpush1.xpose.msra.mxu0 %v44
    %68 = vmatprep.subr.mxu0 0.0
    %69 = vmatpush1.xpose.msra.mxu0 %v43
    %70 = vmatprep.subr.mxu0 0.0
    %71 = vmatpush1.xpose.msra.mxu0 %v42
    %72 = vmatprep.subr.mxu0 0.0
    %73 = vmatpush1.xpose.msra.mxu0 %v41
    %74 = vmatprep.subr.mxu0 0.0
    %75 = vmatpush1.xpose.msra.mxu0 %v40
    %76 = vmatprep.subr.mxu0 0.0
    %77 = vmatpush1.xpose.msra.mxu0 %v39
    %78 = vmatprep.subr.mxu0 0.0
    %79 = vmatpush1.xpose.msra.mxu0 %v38
    %80 = vmatprep.subr.mxu0 0.0
    %81 = vmatpush1.xpose.msra.mxu0 %v37
    %82 = vmatprep.subr.mxu0 0.0
    %83 = vmatpush1.xpose.msra.mxu0 %v36
    %84 = vmatprep.subr.mxu0 0.0
    %85 = vmatpush2.xpose.msra.mxu0 0.0
    %86 = vmatprep.subr.mxu0 0.0
    %87 = vmatpush2.xpose.msra.mxu0 0.0
    %88 = vmatprep.subr.mxu0 0.0
    %89 = vmatpush2.xpose.msra.mxu0 0.0
    %90 = vmatprep.subr.mxu0 0.0
    %91 = vmatpush2.xpose.msra.mxu0 0.0
    %92 = vmatprep.subr.mxu0 0.0
    %93 = vmatpush2.xpose.msra.mxu0 0.0
    %94 = vmatprep.subr.mxu0 0.0
    %95 = vmatpush2.xpose.msra.mxu0 0.0
    %96 = vmatprep.subr.mxu0 0.0
    %97 = vmatpush2.xpose.msra.mxu0 0.0
    %98 = vmatprep.subr.mxu0 0.0
    %99 = vmatpush2.xpose.msra.mxu0 0.0
    %100 = vmatprep.subr.mxu0 0.0
    %101 = vmatpush2.xpose.msra.mxu0 0.0
    %102 = vmatprep.subr.mxu0 0.0
    %103 = vmatpush2.xpose.msra.mxu0 0.0
    %104 = vmatprep.subr.mxu0 0.0
    %105 = vmatpush2.xpose.msra.mxu0 0.0
    %106 = vmatprep.subr.mxu0 0.0
    %107 = vmatpush2.xpose.msra.mxu0 0.0
    %108 = vmatprep.subr.mxu0 0.0
    %109 = vmatpush2.xpose.msra.mxu0 0.0
    %110 = vmatprep.subr.mxu0 0.0
    %111 = vmatpush2.xpose.msra.mxu0 0.0
    %112 = vmatprep.subr.mxu0 0.0
    %113 = vmatpush2.xpose.msra.mxu0 0.0
    %114 = vmatprep.subr.mxu0 0.0
    %115 = vmatpush2.xpose.msra.mxu0 0.0
    %116 = vmatprep.mubr.f32.mxu0 0.0
    %117 = vmatmul.mubr.f32.gmra.mxu0 %v35
    %v118 = vpop.f32.mrf.mxu0
    %v119 = vadd.f32 0.0, %v118
    %v120 = vpop.f32.mrf.mxu0
    %121 = vdwg.mxu0
    %v122 = vadd.f32 %v34, %v119
    %123 = vst [vmem:[#allocation5] sm:$0xff] %v122
    // Predicated region
    $region22: #{call.1} parent=1 // pred_check
      %p124 = pneg %p29
    $region23: #{call.1} parent=1 // pred_check_branch
      %126 = sbr.rel (%p124) target = $region25
    $region24: #{call.1} parent=1 // pred_region
      %v127 = vld [vmem:[#allocation5] sm:$0xff]
      %v128 = vld [vmem:[%s2] sm:$0x1]
      %v130 = vlaneseq
      %v131 = vshrl.u32 %v130, 7
      %v132 = vsub.s32 0, %v131
      %v133 = vrot.slane %v128, %v132
      %v135 = vadd.f32 %v127, %v133
      %v136 = vmul.f32 %v135, 0.5
      %v137 = vtanh.pop %v136
      %v138 = vadd.f32 %v137, 1.0
      %v139 = vmul.f32 %v138, 0.5
      %v140 = vmul.f32 %v135, %v139
      %141 = vst [vmem:[#allocation5] sm:$0xff] %v140
    $region25: #{call.1} parent=1 // pred_fallthru
      _
    // Predicated region
    $region26: #{call.1} parent=1 // pred_check
      _
    $region27: #{call.1} parent=1 // pred_check_branch
      %143 = sbr.rel (0) target = $region29
    $region28: #{call.1} parent=1 // pred_region
      %s145 = ssub.s32 128, 128
      %146 = vsyncadd [#allocation4], %s145
      %s148 = sshll.u32 [#allocation5], 4
      %s149 = int_to_ptr.vmem [resolvable:$true] %s148
      %151 = dma.vmem_to_hbm [thread:$0]  %s149, 128, %s3, [#allocation4]
    $region29: #{call.1} parent=1 // pred_fallthru
      _
    // Predicated region
    $region30: #{call.1} parent=1 // pred_check
      _
    $region31: #{call.1} parent=1 // pred_check_branch
      %153 = sbr.rel (0) target = $region33
    $region32: #{call.1} parent=1 // pred_region
      %154 = dma.done [#allocation4], 128
    $region33: #{call.1} parent=1 // pred_fallthru
      _
    %155 = vsyncpa [#allocation3], 1
    %156 = vsyncpa [#allocation4], 1

</llo_original>
